<compile_context>
chip_gen: v6e
topology: v6e:2x2x1
jax: 0.10.0
libtpu: 0.0.40
codegen_flags: <defaults>
</compile_context>

<pallas_src>
import jax
import jax.numpy as jnp
from jax.experimental import pallas as pl
from jax.experimental.pallas import tpu as pltpu


# ----------------------------------------------------------------------------
# Kernel: one (batch_tile, col_tile) output block per grid step.
#   x tile      : (Bt, rows)   bf16   (block index constant over j)
#   A_wT (full) : (rows, rank) bf16   (pre-transposed in wrapper)
#   B_wT tile   : (rank, Tn)   bf16   (pre-transposed in wrapper)
#   out tile    : (Bt, Tn)     out dtype
#   h scratch   : (Bt, rank)   f32 VMEM, persists across the inner j axis
# ----------------------------------------------------------------------------
def matfact_kernel(x_ref, awt_ref, bwt_ref, o_ref, h_ref):
    # Rank projection computed once per batch tile (j == 0), reused for all
    # column tiles of that batch tile.
    @pl.when(pl.program_id(1) == 0)
    def _():
        h_ref[...] = jnp.dot(x_ref[...], awt_ref[...],
                             preferred_element_type=jnp.float32)

    # y = h @ B_w.T for this column tile; f32 accumulation on the MXU.
    y = jnp.dot(h_ref[...].astype(bwt_ref.dtype), bwt_ref[...],
                preferred_element_type=jnp.float32)
    o_ref[...] = y.astype(o_ref.dtype)


def _round_up(x, m):
    return ((x + m - 1) // m) * m


def _cdiv(a, b):
    return -(-a // b)


def _vmem_capacity_bytes():
    # Physical VMEM per core; conservative (v7x-sized) fallback if unavailable.
    try:
        return int(pltpu.get_tpu_info().vmem_capacity_bytes)
    except Exception:
        return 64 * 1024 * 1024


def _auto_batch_tile(batch, cap):
    # Split the batch into roughly equal tiles of at most `cap` rows, rounded
    # up to 16 (bf16 packs 2 rows per sublane -> fully packed vregs). Force
    # >= 2 tiles when batch > 128 so the "parallel" batch axis can be sharded
    # across both v7x TensorCores instead of leaving one idle.
    n_tiles = _cdiv(batch, cap)
    if batch > 128:
        n_tiles = max(n_tiles, 2)
    bt = _round_up(_cdiv(batch, n_tiles), 16)
    return min(cap, bt)


def _auto_col_tile(cols_p, cap):
    # cols_p is a multiple of 128; pick the largest 128-multiple divisor <= cap
    # so output blocks stay lane-dense (unmasked vst).
    if cols_p <= cap:
        return cols_p
    t = cap - (cap % 128)
    while t >= 128:
        if cols_p % t == 0:
            return t
        t -= 128
    return 128


def matrix_factorization_forward(x, a_weight, b_weight, *,
                                 batch_tile=None, col_tile=None,
                                 compute_dtype=jnp.bfloat16,
                                 out_dtype=None):
    """x: (batch, rows); a_weight: (rank, rows); b_weight: (cols, rank)."""
    batch, rows = x.shape
    rank, rows_w = a_weight.shape
    cols, rank_w = b_weight.shape
    assert rows == rows_w and rank == rank_w

    # bf16 output halves HBM writeback (the dominant traffic term at low rank);
    # default keeps x.dtype for accuracy parity with the PyTorch reference.
    out_dtype = x.dtype if out_dtype is None else out_dtype

    vmem_phys = _vmem_capacity_bytes()
    big_vmem = vmem_phys >= 96 * 1024 * 1024      # v5e / v6e: 128 MiB per core
    bt_cap = 512 if big_vmem else 256             # v7x (64 MiB): keep <= 256
    tn_cap = 512 if big_vmem else 256

    cols_p = _round_up(cols, 128)                 # lane-dense output padding
    bt = batch_tile if batch_tile is not None else _auto_batch_tile(batch, bt_cap)
    tn = col_tile if col_tile is not None else _auto_col_tile(cols_p, tn_cap)
    assert cols_p % tn == 0, "col_tile must divide padded cols"
    batch_p = _round_up(batch, bt)

    in_bytes = jnp.dtype(compute_dtype).itemsize
    out_bytes = jnp.dtype(out_dtype).itemsize

    # One-time layout / dtype prep (cheap XLA ops, outside the kernel).
    xc = x.astype(compute_dtype)
    if batch_p != batch:
        xc = jnp.pad(xc, ((0, batch_p - batch), (0, 0)))
    a_wT = a_weight.T.astype(compute_dtype)       # (rows, rank)
    b_wT = b_weight.T.astype(compute_dtype)       # (rank, cols)
    if cols_p != cols:
        b_wT = jnp.pad(b_wT, ((0, 0), (0, cols_p - cols)))

    grid = (batch_p // bt, cols_p // tn)

    in_specs = [
        pl.BlockSpec((bt, rows), lambda i, j: (i, 0)),       # x: constant in j
        pl.BlockSpec((rows, rank), lambda i, j: (0, 0)),     # A_wT: invariant
        pl.BlockSpec((rank, tn), lambda i, j: (0, j)),       # B_wT: hot inner axis
    ]
    out_spec = pl.BlockSpec((bt, tn), lambda i, j: (i, j))

    # Double-buffered working set: x/out/B tiles + weights + h scratch.
    vmem_est = (2 * bt * rows * in_bytes
                + 2 * bt * tn * out_bytes
                + 2 * (rows * rank + rank * tn) * in_bytes
                + bt * max(rank, 128) * 4)
    vmem_limit = None
    if vmem_est > 16 * 1024 * 1024:   # smallest default scoped limit (v5e)
        # Leave headroom for compiler scratch: never request > ~13/16 of
        # physical VMEM (~52 MiB on v7x, ~104 MiB on v5e/v6e).
        vmem_limit = min(int(vmem_est * 3 // 2), int(vmem_phys * 13 // 16))

    # h computed once per batch tile -> flops matches executed work.
    flops = 2 * batch_p * rank * (rows + cols_p)
    bytes_accessed = (batch_p * rows * in_bytes
                      + batch_p * cols_p * out_bytes
                      + rows * rank * in_bytes
                      + grid[0] * rank * cols_p * in_bytes)

    call = pl.pallas_call(
        matfact_kernel,
        out_shape=jax.ShapeDtypeStruct((batch_p, cols_p), out_dtype),
        grid_spec=pltpu.PrefetchScalarGridSpec(
            num_scalar_prefetch=0,
            grid=grid,
            in_specs=in_specs,
            out_specs=out_spec,
            scratch_shapes=[pltpu.VMEM((bt, rank), jnp.float32)],
        ),
        compiler_params=pltpu.CompilerParams(
            # batch axis parallel (megacore-shardable); col axis is the hot
            # inner loop reusing the cached h -> must be "arbitrary".
            dimension_semantics=("parallel", "arbitrary"),
            vmem_limit_bytes=vmem_limit,
        ),
        cost_estimate=pl.CostEstimate(
            flops=flops, transcendentals=0, bytes_accessed=bytes_accessed),
    )
    out = call(xc, a_wT, b_wT)

    if batch_p != batch or cols_p != cols:
        out = out[:batch, :cols]
    return out


if __name__ == "__main__":
    # Small shapes consistent with the module: rows=128, cols=128, rank=32, batch=8
    rows, cols, rank = 128, 128, 32
    batch = 8

    key = jax.random.PRNGKey(0)
    kx, ka, kb = jax.random.split(key, 3)

    x = jax.random.normal(kx, (batch, rows), dtype=jnp.float32)
    # PyTorch layout: (out_features, in_features)
    a_weight = jax.random.normal(ka, (rank, rows), dtype=jnp.float32) * (1.0 / rows) ** 0.5
    b_weight = jax.random.normal(kb, (cols, rank), dtype=jnp.float32) * (1.0 / rank) ** 0.5

    out = matrix_factorization_forward(x, a_weight, b_weight)
    out = jax.block_until_ready(out)

    # Reference in plain JAX (f32); bf16 MXU operands -> loosened tolerance.
    ref = (x @ a_weight.T) @ b_weight.T
    assert out.shape == (batch, cols)
    assert jnp.allclose(out, ref, atol=5e-2, rtol=5e-2), \
        float(jnp.max(jnp.abs(out - ref)))

    print("KERNEL_OK")
</pallas_src>

<mosaic_0001>
module attributes {stable_mosaic.version = 11 : i64} {
  func.func @matfact_kernel(%arg0: i32, %arg1: i32, %arg2: memref<16x128xbf16, #tpu.memory_space<vmem>>, %arg3: memref<128x32xbf16, #tpu.memory_space<vmem>>, %arg4: memref<32x128xbf16, #tpu.memory_space<vmem>>, %arg5: memref<16x128xf32, #tpu.memory_space<vmem>>, %arg6: memref<16x32xf32, #tpu.memory_space<vmem>>) attributes {dimension_semantics = [#tpu.dimension_semantics<parallel>, #tpu.dimension_semantics<arbitrary>], iteration_bounds = array<i64: 1, 1>, scalar_prefetch = 0 : i64, scratch_operands = 1 : i64, tpu.core_type = #tpu.core_type<tc>, window_params = [{transform_indices = @transform_0, window_bounds = array<i64: 16, 128>}, {pipeline_mode = #tpu.pipeline_mode<synchronous>, transform_indices = @transform_1, window_bounds = array<i64: 128, 32>}, {transform_indices = @transform_2, window_bounds = array<i64: 32, 128>}, {transform_indices = @transform_3, window_bounds = array<i64: 16, 128>}]} {
    %c0_i32 = arith.constant 0 : i32
    %0 = arith.cmpi eq, %arg1, %c0_i32 : i32
    %1 = arith.extui %0 : i1 to i32
    %c0_i32_0 = arith.constant 0 : i32
    %2 = arith.cmpi ne, %1, %c0_i32_0 : i32
    scf.if %2 {
      %c0_6 = arith.constant 0 : index
      %c0_7 = arith.constant 0 : index
      %8 = vector.load %arg2[%c0_6, %c0_7] : memref<16x128xbf16, #tpu.memory_space<vmem>>, vector<16x128xbf16>
      %c0_8 = arith.constant 0 : index
      %c0_9 = arith.constant 0 : index
      %9 = vector.load %arg3[%c0_8, %c0_9] : memref<128x32xbf16, #tpu.memory_space<vmem>>, vector<128x32xbf16>
      %cst_10 = arith.constant dense<0.000000e+00> : vector<16x32xf32>
      %10 = tpu.matmul %8, %9, %cst_10 {dimension_numbers = #tpu.dot_dimension_numbers<[1], [0], [0], [1], [0, 0, 1, 1], [], []>} : vector<16x128xbf16>, vector<128x32xbf16>, vector<16x32xf32> -> vector<16x32xf32>
      %c0_11 = arith.constant 0 : index
      %c0_12 = arith.constant 0 : index
      %11 = vector.load %arg6[%c0_11, %c0_12] : memref<16x32xf32, #tpu.memory_space<vmem>>, vector<16x32xf32>
      tpu.vector_store %arg6[%c0_11, %c0_12], %10 {strides = array<i32>} : memref<16x32xf32, #tpu.memory_space<vmem>>, vector<16x32xf32>,
    } else {
    }
    %c0 = arith.constant 0 : index
    %c0_1 = arith.constant 0 : index
    %3 = vector.load %arg6[%c0, %c0_1] : memref<16x32xf32, #tpu.memory_space<vmem>>, vector<16x32xf32>
    %4 = arith.truncf %3 : vector<16x32xf32> to vector<16x32xbf16>
    %c0_2 = arith.constant 0 : index
    %c0_3 = arith.constant 0 : index
    %5 = vector.load %arg4[%c0_2, %c0_3] : memref<32x128xbf16, #tpu.memory_space<vmem>>, vector<32x128xbf16>
    %cst = arith.constant dense<0.000000e+00> : vector<16x128xf32>
    %6 = tpu.matmul %4, %5, %cst {dimension_numbers = #tpu.dot_dimension_numbers<[1], [0], [0], [1], [0, 0, 1, 1], [], []>} : vector<16x32xbf16>, vector<32x128xbf16>, vector<16x128xf32> -> vector<16x128xf32>
    %c0_4 = arith.constant 0 : index
    %c0_5 = arith.constant 0 : index
    %7 = vector.load %arg5[%c0_4, %c0_5] : memref<16x128xf32, #tpu.memory_space<vmem>>, vector<16x128xf32>
    tpu.vector_store %arg5[%c0_4, %c0_5], %6 {strides = array<i32>} : memref<16x128xf32, #tpu.memory_space<vmem>>, vector<16x128xf32>,
    return
  }
  func.func @transform_0(%arg0: i32, %arg1: i32) -> (i32, i32) {
    %c0_i32 = arith.constant 0 : i32
    %c0_i32_0 = arith.constant 0 : i32
    return %arg0, %c0_i32 : i32, i32
  }
  func.func @transform_1(%arg0: i32, %arg1: i32) -> (i32, i32) {
    %c0_i32 = arith.constant 0 : i32
    %c0_i32_0 = arith.constant 0 : i32
    %c0_i32_1 = arith.constant 0 : i32
    return %c0_i32, %c0_i32_0 : i32, i32
  }
  func.func @transform_2(%arg0: i32, %arg1: i32) -> (i32, i32) {
    %c0_i32 = arith.constant 0 : i32
    %c0_i32_0 = arith.constant 0 : i32
    return %c0_i32, %arg1 : i32, i32
  }
  func.func @transform_3(%arg0: i32, %arg1: i32) -> (i32, i32) {
    %c0_i32 = arith.constant 0 : i32
    return %arg0, %arg1 : i32, i32
  }
}

</mosaic_0001>

<llo_original>
// kernel: tpu_custom_call.1
$region0: #{tpu_custom_call.1}
  #allocation0 [shape = 'u32[]', space=smem, size = 0x4, offset = 0x4, fixed_abs, tag = 'smem constant byte address 0x4 - core index']
  #allocation1 [shape = 'u32[144,128]{1,0:T(1,128)}', space=vmem, size = 0x12000, scoped, tag = 'internal scratch']
  #allocation2 [shape = 'f32[16,32]{1,0:T(8,128)}', space=vmem, size = 0x2000, scoped, tag = 'scratch operand']
  %s0 = inlined_call_operand.vmem [shape: bf16[16,128], index: 0, kind: input, shape index: {}]
  %s1 = inlined_call_operand.vmem [shape: bf16[128,32], index: 1, kind: input, shape index: {}]
  %s2 = inlined_call_operand.vmem [shape: bf16[32,128], index: 2, kind: input, shape index: {}]
  %s3 = inlined_call_operand.hbm [shape: f32[16,128], index: 3, kind: output, shape index: {}]
  %s4 = sld [smem:[#allocation0]]
  $region26: #{tpu_custom_call.1} parent=0
    _
  %s6 = ssub.s32 1, %s4
  %s7 = scalar_select 0, %s6, %s4
  $region1: #{tpu_custom_call.1} parent=0
    #allocation3 [shape = 'u8[8192]{0}', space=vmem, size = 0x2000, scoped, tag = 'output window, operand 0, single buffered']
    #allocation4 [shape = 's32[1]{0}', space=sflag, size = 0x4, scoped, tag = 'scoped memory for tpu_custom_call.1']
    %8 = vsyncpa [#allocation4], 0
    // Predicated region
    $region2: #{tpu_custom_call.1} parent=1 // pred_check
      _
    $region3: #{tpu_custom_call.1} parent=1 // pred_check_branch
      %10 = sbr.rel (0) target = $region5
    $region4: #{tpu_custom_call.1} parent=1 // pred_region
      _
    $region5: #{tpu_custom_call.1} parent=1 // pred_fallthru
      _
    // Predicated region
    $region6: #{tpu_custom_call.1} parent=1 // pred_check
      _
    $region7: #{tpu_custom_call.1} parent=1 // pred_check_branch
      %12 = sbr.rel (0) target = $region9
    $region8: #{tpu_custom_call.1} parent=1 // pred_region
      _
    $region9: #{tpu_custom_call.1} parent=1 // pred_fallthru
      _
    // Predicated region
    $region10: #{tpu_custom_call.1} parent=1 // pred_check
      _
    $region11: #{tpu_custom_call.1} parent=1 // pred_check_branch
      %14 = sbr.rel (0) target = $region13
    $region12: #{tpu_custom_call.1} parent=1 // pred_region
      _
    $region13: #{tpu_custom_call.1} parent=1 // pred_fallthru
      _
    %p16 = scmp.eq.s32.totalorder 0, 0
    // Predicated region
    $region14: #{tpu_custom_call.1} parent=1 // pred_check
      %p17 = pneg %p16
    $region15: #{tpu_custom_call.1} parent=1 // pred_check_branch
      %19 = sbr.rel (%p17) target = $region17
    $region16: #{tpu_custom_call.1} parent=1 // pred_region
      %v20 = vld [vmem:[%s0] sm:$0xf]
      %v21 = vld [vmem:[%s0 + $0x4] sm:$0xf]
      %v22 = vld [vmem:[%s1] sm:$0xf]
      %v23 = vld [vmem:[%s1 + $0x4] sm:$0xf]
      %v24 = vld [vmem:[%s1 + $0x8] sm:$0xf]
      %v25 = vld [vmem:[%s1 + $0xc] sm:$0xf]
      %v26 = vld [vmem:[%s1 + $0x10] sm:$0xf]
      %v27 = vld [vmem:[%s1 + $0x14] sm:$0xf]
      %v28 = vld [vmem:[%s1 + $0x18] sm:$0xf]
      %v29 = vld [vmem:[%s1 + $0x1c] sm:$0xf]
      %v30 = vld [vmem:[%s1 + $0x20] sm:$0xf]
      %v31 = vld [vmem:[%s1 + $0x24] sm:$0xf]
      %v32 = vld [vmem:[%s1 + $0x28] sm:$0xf]
      %v33 = vld [vmem:[%s1 + $0x2c] sm:$0xf]
      %v34 = vld [vmem:[%s1 + $0x30] sm:$0xf]
      %v35 = vld [vmem:[%s1 + $0x34] sm:$0xf]
      %v36 = vld [vmem:[%s1 + $0x38] sm:$0xf]
      %v37 = vld [vmem:[%s1 + $0x3c] sm:$0xf]
      %v40 = vunpack.c.l.b16 %v20
      %v41 = vunpack.c.l.b16 %v21
      %v42 = vpack.c.b16 %v41, %v40
      %v60 = vunpack.c.l.b16 %v22
      %v61 = vunpack.c.l.b16 %v23
      %v62 = vunpack.c.l.b16 %v24
      %v63 = vunpack.c.l.b16 %v25
      %v64 = vunpack.c.l.b16 %v26
      %v65 = vunpack.c.l.b16 %v27
      %v66 = vunpack.c.l.b16 %v28
      %v67 = vunpack.c.l.b16 %v29
      %v68 = vunpack.c.l.b16 %v30
      %v69 = vunpack.c.l.b16 %v31
      %v70 = vunpack.c.l.b16 %v32
      %v71 = vunpack.c.l.b16 %v33
      %v72 = vunpack.c.l.b16 %v34
      %v73 = vunpack.c.l.b16 %v35
      %v74 = vunpack.c.l.b16 %v36
      %v75 = vunpack.c.l.b16 %v37
      %v76 = vpack.c.b16 %v61, %v60
      %v77 = vpack.c.b16 %v63, %v62
      %v78 = vpack.c.b16 %v65, %v64
      %v79 = vpack.c.b16 %v67, %v66
      %v80 = vpack.c.b16 %v69, %v68
      %v81 = vpack.c.b16 %v71, %v70
      %v82 = vpack.c.b16 %v73, %v72
      %v83 = vpack.c.b16 %v75, %v74
      %92 = vmatprep.subr.bf16.mxu0 0
      %93 = vmatpush1.bf16.msra.mxu0 %v83
      %94 = vmatprep.subr.bf16.mxu0 0
      %95 = vmatpush1.bf16.msra.mxu0 %v82
      %96 = vmatprep.subr.bf16.mxu0 0
      %97 = vmatpush1.bf16.msra.mxu0 %v81
      %98 = vmatprep.subr.bf16.mxu0 0
      %99 = vmatpush1.bf16.msra.mxu0 %v80
      %100 = vmatprep.subr.bf16.mxu0 0
      %101 = vmatpush1.bf16.msra.mxu0 %v79
      %102 = vmatprep.subr.bf16.mxu0 0
      %103 = vmatpush1.bf16.msra.mxu0 %v78
      %104 = vmatprep.subr.bf16.mxu0 0
      %105 = vmatpush1.bf16.msra.mxu0 %v77
      %106 = vmatprep.subr.bf16.mxu0 0
      %107 = vmatpush1.bf16.msra.mxu0 %v76
      %108 = vmatprep.subr.bf16.mxu0 0
      %109 = vmatpush2.bf16.msra.mxu0 0
      %110 = vmatprep.subr.bf16.mxu0 0
      %111 = vmatpush2.bf16.msra.mxu0 0
      %112 = vmatprep.subr.bf16.mxu0 0
      %113 = vmatpush2.bf16.msra.mxu0 0
      %114 = vmatprep.subr.bf16.mxu0 0
      %115 = vmatpush2.bf16.msra.mxu0 0
      %116 = vmatprep.subr.bf16.mxu0 0
      %117 = vmatpush2.bf16.msra.mxu0 0
      %118 = vmatprep.subr.bf16.mxu0 0
      %119 = vmatpush2.bf16.msra.mxu0 0
      %120 = vmatprep.subr.bf16.mxu0 0
      %121 = vmatpush2.bf16.msra.mxu0 0
      %122 = vmatprep.subr.bf16.mxu0 0
      %123 = vmatpush2.bf16.msra.mxu0 0
      %124 = vmatprep.mubr.bf16.mxu0 0
      %125 = vmatmul.mubr.bf16.gmra.mxu0 %v42
      %v126 = vpop.f32.mrf.mxu0
      %v127 = vadd.f32 0.0, %v126
      %v128 = vpop.f32.mrf.mxu0
      %v129 = vpop.f32.mrf.mxu0
      %v130 = vadd.f32 0.0, %v129
      %v131 = vpop.f32.mrf.mxu0
      %132 = vdwg.mxu0
      %vm133 = vcmask 261120
      %134 = vst.msk [vmem:[#allocation2] sm:$0xff] %vm133, %v127
      %135 = vst.msk [vmem:[#allocation2 + $0x8] sm:$0xff] %vm133, %v130
    $region17: #{tpu_custom_call.1} parent=1 // pred_fallthru
      _
    %v136 = vld [vmem:[#allocation2] sm:$0xff]
    %v137 = vld [vmem:[#allocation2 + $0x8] sm:$0xff]
    %v138 = vpack.c.bf16 %v137, %v136
    %v139 = vld [vmem:[%s2] sm:$0xf]
    %v140 = vld [vmem:[%s2 + $0x4] sm:$0xf]
    %v141 = vld [vmem:[%s2 + $0x8] sm:$0xf]
    %v142 = vld [vmem:[%s2 + $0xc] sm:$0xf]
    %v147 = vunpack.c.l.b16 %v139
    %v148 = vunpack.c.l.b16 %v140
    %v149 = vunpack.c.l.b16 %v141
    %v150 = vunpack.c.l.b16 %v142
    %v151 = vpack.c.b16 %v148, %v147
    %v152 = vpack.c.b16 %v150, %v149
    %vm155 = vcmask 261120
    %v157 = vsel %vm155, %v138, 0
    %159 = vmatprep.subr.bf16.mxu0 0
    %160 = vmatpush1.bf16.msra.mxu0 0
    %161 = vmatprep.subr.bf16.mxu0 0
    %162 = vmatpush1.bf16.msra.mxu0 0
    %163 = vmatprep.subr.bf16.mxu0 0
    %164 = vmatpush1.bf16.msra.mxu0 0
    %165 = vmatprep.subr.bf16.mxu0 0
    %166 = vmatpush1.bf16.msra.mxu0 0
    %167 = vmatprep.subr.bf16.mxu0 0
    %168 = vmatpush1.bf16.msra.mxu0 0
    %169 = vmatprep.subr.bf16.mxu0 0
    %170 = vmatpush1.bf16.msra.mxu0 0
    %171 = vmatprep.subr.bf16.mxu0 0
    %172 = vmatpush1.bf16.msra.mxu0 %v152
    %173 = vmatprep.subr.bf16.mxu0 0
    %174 = vmatpush1.bf16.msra.mxu0 %v151
    %175 = vmatprep.subr.bf16.mxu0 0
    %176 = vmatpush2.bf16.msra.mxu0 0
    %177 = vmatprep.subr.bf16.mxu0 0
    %178 = vmatpush2.bf16.msra.mxu0 0
    %179 = vmatprep.subr.bf16.mxu0 0
    %180 = vmatpush2.bf16.msra.mxu0 0
    %181 = vmatprep.subr.bf16.mxu0 0
    %182 = vmatpush2.bf16.msra.mxu0 0
    %183 = vmatprep.subr.bf16.mxu0 0
    %184 = vmatpush2.bf16.msra.mxu0 0
    %185 = vmatprep.subr.bf16.mxu0 0
    %186 = vmatpush2.bf16.msra.mxu0 0
    %187 = vmatprep.subr.bf16.mxu0 0
    %188 = vmatpush2.bf16.msra.mxu0 0
    %189 = vmatprep.subr.bf16.mxu0 0
    %190 = vmatpush2.bf16.msra.mxu0 0
    %191 = vmatprep.mubr.bf16.mxu0 0
    %192 = vmatmul.mubr.bf16.gmra.mxu0 %v157
    %v193 = vpop.f32.mrf.mxu0
    %v194 = vadd.f32 0.0, %v193
    %v195 = vpop.f32.mrf.mxu0
    %v196 = vpop.f32.mrf.mxu0
    %v197 = vadd.f32 0.0, %v196
    %v198 = vpop.f32.mrf.mxu0
    %199 = vdwg.mxu0
    %200 = vst [vmem:[#allocation3] sm:$0xff] %v194
    %201 = vst [vmem:[#allocation3 + $0x8] sm:$0xff] %v197
    // Predicated region
    $region18: #{tpu_custom_call.1} parent=1 // pred_check
      _
    $region19: #{tpu_custom_call.1} parent=1 // pred_check_branch
      %203 = sbr.rel (0) target = $region21
    $region20: #{tpu_custom_call.1} parent=1 // pred_region
      %s205 = ssub.s32 256, 256
      %206 = vsyncadd [#allocation4], %s205
      %s207 = sshll.u32 [#allocation3], 4
      %s208 = int_to_ptr.vmem [resolvable:$true] %s207
      %213 = dma.vmem_to_hbm [thread:$0]  %s208, 256, %s3, [#allocation4], 128, 128, 8
    $region21: #{tpu_custom_call.1} parent=1 // pred_fallthru
      _
    // Predicated region
    $region22: #{tpu_custom_call.1} parent=1 // pred_check
      _
    $region23: #{tpu_custom_call.1} parent=1 // pred_check_branch
      %215 = sbr.rel (0) target = $region25
    $region24: #{tpu_custom_call.1} parent=1 // pred_region
      %216 = dma.done [#allocation4], 256
    $region25: #{tpu_custom_call.1} parent=1 // pred_fallthru
      _
    %217 = vsyncpa [#allocation4], 1

</llo_original>
